<compile_context>
chip_gen: v7x
topology: tpu7x:2x2x1
jax: 0.10.0
libtpu: 0.0.40
codegen_flags: <defaults>
</compile_context>

<pallas_src>
import functools
import math

import jax
import jax.numpy as jnp
from jax import lax
from jax.experimental import pallas as pl
from jax.experimental.pallas import tpu as pltpu

EPS = 1e-5                                  # BatchNorm2d default eps
_FUSED_MAX_INPUT_BYTES = 2 * 1024 * 1024    # use single fused pass when x fits here
_TWO_PASS_BLOCK_BYTES = 1 * 1024 * 1024     # per-grid-step input block target


def _conv2x2_valid(xv, w00, w01, w10, w11):
    """2x2 'valid' cross-correlation on a (Nb, H, W) tile -> (Nb, H-1, W-1).

    Static shifted slices produce exactly the valid window, so no wrap-around
    garbage and no masking anywhere downstream."""
    return (w00 * xv[:, :-1, :-1] + w01 * xv[:, :-1, 1:]
            + w10 * xv[:, 1:, :-1] + w11 * xv[:, 1:, 1:])


# ----------------------------- fused single-pass path ------------------------
def _fused_kernel(p_ref, x_ref, o_ref, *, inv_count):
    # p_ref: SMEM f32[8] = [w00, w01, w10, w11, gamma, beta, ct_w, ct_b]
    # x_ref: VMEM (N, H, W); o_ref: VMEM (N, H-1, W-1)
    conv = _conv2x2_valid(x_ref[...], p_ref[0], p_ref[1], p_ref[2], p_ref[3])
    s = jnp.sum(conv, axis=(0, 1, 2), keepdims=True)            # (1,1,1)
    ss = jnp.sum(conv * conv, axis=(0, 1, 2), keepdims=True)    # (1,1,1)
    mean = s * inv_count
    var = jnp.maximum(ss * inv_count - mean * mean, 0.0)        # biased var (train BN)
    inv = lax.rsqrt(var + EPS)
    gamma, beta, ct_w, ct_b = p_ref[4], p_ref[5], p_ref[6], p_ref[7]
    a = ct_w * gamma * inv
    b = ct_w * (beta - gamma * mean * inv) + ct_b
    o_ref[...] = a * conv + b


# ------------------------ two-pass fallback (large inputs) -------------------
def _stats_kernel(w_ref, x_ref, sum_ref, sumsq_ref):
    # w_ref: SMEM f32[4]; x_ref: VMEM (Nb, H, W); outputs: VMEM (1, 1, 1)
    conv = _conv2x2_valid(x_ref[...], w_ref[0], w_ref[1], w_ref[2], w_ref[3])
    sum_ref[...] = jnp.sum(conv, axis=(0, 1, 2), keepdims=True)
    sumsq_ref[...] = jnp.sum(conv * conv, axis=(0, 1, 2), keepdims=True)


def _apply_kernel(p_ref, x_ref, o_ref):
    # p_ref: SMEM f32[5] = [A*w00, A*w01, A*w10, A*w11, B]; BN scale A is folded
    # into the conv weights host-side -> 4-term FMA + bias (one less VALU op/elem).
    conv = _conv2x2_valid(x_ref[...], p_ref[0], p_ref[1], p_ref[2], p_ref[3])
    o_ref[...] = conv + p_ref[4]


def _batch_block(n, per_image_bytes, budget):
    nb = max(1, min(n, budget // max(per_image_bytes, 1)))
    while n % nb:
        nb -= 1
    return nb


@functools.partial(jax.jit, static_argnames=("force_two_pass",))
def model_forward(x_nchw, params, *, force_two_pass=False):
    N, C, H, W = x_nchw.shape
    assert C == 1 and H >= 2 and W >= 2, "module is Conv2d(1, 1, 2)"
    Ho, Wo = H - 1, W - 1
    count = N * Ho * Wo

    x = x_nchw.reshape(N, H, W).astype(jnp.float32)       # drop unit channel (free)
    w4 = params["conv_w"].reshape(4).astype(jnp.float32)

    if not force_two_pass and N * H * W * 4 <= _FUSED_MAX_INPUT_BYTES:
        # ---- one kernel: conv + global BN stats + folded epilogue; x read once
        p8 = jnp.concatenate([
            w4,
            jnp.stack([params["gamma"], params["beta"],
                       params["ct_w"], params["ct_b"]]).astype(jnp.float32),
        ])
        out = pl.pallas_call(
            functools.partial(_fused_kernel, inv_count=1.0 / count),
            grid=(1,),
            out_shape=jax.ShapeDtypeStruct((N, Ho, Wo), jnp.float32),
            in_specs=[
                pl.BlockSpec(memory_space=pltpu.MemorySpace.SMEM),   # params
                pl.BlockSpec((N, H, W), lambda i: (0, 0, 0)),        # whole x
            ],
            out_specs=pl.BlockSpec((N, Ho, Wo), lambda i: (0, 0, 0)),
            compiler_params=pltpu.CompilerParams(
                vmem_limit_bytes=32 * 1024 * 1024),
        )(p8, x)
        return out.reshape(N, 1, Ho, Wo)

    # ---- pass 1: per-block partial sum / sumsq of the conv output ------------
    nb = _batch_block(N, H * W * 4, _TWO_PASS_BLOCK_BYTES)
    nblk = N // nb
    sums, sumsqs = pl.pallas_call(
        _stats_kernel,
        grid=(nblk,),
        out_shape=(jax.ShapeDtypeStruct((nblk, 1, 1), jnp.float32),
                   jax.ShapeDtypeStruct((nblk, 1, 1), jnp.float32)),
        in_specs=[
            pl.BlockSpec(memory_space=pltpu.MemorySpace.SMEM),        # conv weights
            pl.BlockSpec((nb, H, W), lambda i: (i, 0, 0)),            # nb images
        ],
        out_specs=(pl.BlockSpec((1, 1, 1), lambda i: (i, 0, 0)),
                   pl.BlockSpec((1, 1, 1), lambda i: (i, 0, 0))),
        compiler_params=pltpu.CompilerParams(
            dimension_semantics=("parallel",),
            vmem_limit_bytes=32 * 1024 * 1024),
    )(w4, x)

    # ---- fold BN(train) + ConvTranspose2d(1,1,1) into A*conv + B -------------
    mean = jnp.sum(sums) / count
    var = jnp.maximum(jnp.sum(sumsqs) / count - mean * mean, 0.0)
    inv = lax.rsqrt(var + EPS)
    a = params["ct_w"] * params["gamma"] * inv
    b = params["ct_w"] * (params["beta"] - params["gamma"] * mean * inv) + params["ct_b"]
    p5 = jnp.concatenate([a * w4, jnp.reshape(b, (1,))]).astype(jnp.float32)

    # ---- pass 2: conv with A-scaled weights + bias B, valid region stored ----
    out = pl.pallas_call(
        _apply_kernel,
        grid=(nblk,),
        out_shape=jax.ShapeDtypeStruct((N, Ho, Wo), jnp.float32),
        in_specs=[
            pl.BlockSpec(memory_space=pltpu.MemorySpace.SMEM),        # [A*w, B]
            pl.BlockSpec((nb, H, W), lambda i: (i, 0, 0)),
        ],
        out_specs=pl.BlockSpec((nb, Ho, Wo), lambda i: (i, 0, 0)),
        compiler_params=pltpu.CompilerParams(
            dimension_semantics=("parallel",),
            vmem_limit_bytes=32 * 1024 * 1024),
    )(p5, x)
    return out.reshape(N, 1, Ho, Wo)


def reference_forward(x_nchw, params):
    """Pure-jnp reference matching the PyTorch module in train mode."""
    x = x_nchw[:, 0].astype(jnp.float32)
    w = params["conv_w"]
    conv = (w[0, 0] * x[:, :-1, :-1] + w[0, 1] * x[:, :-1, 1:]
            + w[1, 0] * x[:, 1:, :-1] + w[1, 1] * x[:, 1:, 1:]) + params["conv_b"]
    mean = jnp.mean(conv)
    var = jnp.mean((conv - mean) ** 2)
    bn = params["gamma"] * (conv - mean) * lax.rsqrt(var + EPS) + params["beta"]
    y = params["ct_w"] * bn + params["ct_b"]
    return y[:, None, :, :]


def init_params(key):
    """Deterministic init mirroring PyTorch default inits (shapes from __init__)."""
    k_w, k_b, k_tw, k_tb = jax.random.split(key, 4)
    bound = 1.0 / math.sqrt(4.0)  # Conv2d(1,1,2): k = 1/(1*2*2)
    return dict(
        conv_w=jax.random.uniform(k_w, (2, 2), jnp.float32, -bound, bound),
        conv_b=jax.random.uniform(k_b, (), jnp.float32, -bound, bound),
        gamma=jnp.float32(1.0),              # BatchNorm2d(1)
        beta=jnp.float32(0.0),
        ct_w=jax.random.uniform(k_tw, (), jnp.float32, -1.0, 1.0),   # ConvTranspose2d(1,1,1)
        ct_b=jax.random.uniform(k_tb, (), jnp.float32, -1.0, 1.0),
    )


if __name__ == "__main__":
    key = jax.random.PRNGKey(0)
    k_x, k_p = jax.random.split(key)

    # Small input consistent with the module: (N, 1, H, W)
    x = jax.random.normal(k_x, (2, 1, 16, 16), dtype=jnp.float32)
    params = init_params(k_p)

    y_ref = reference_forward(x, params)

    # fused single-pass path (default for small inputs)
    y = model_forward(x, params)
    jax.block_until_ready(y)
    assert y.shape == (2, 1, 15, 15)
    err = float(jnp.max(jnp.abs(y - y_ref)))
    assert err < 1e-4, f"fused path mismatch vs reference: {err}"

    # also exercise the batched two-pass fallback path
    y2 = model_forward(x, params, force_two_pass=True)
    jax.block_until_ready(y2)
    err2 = float(jnp.max(jnp.abs(y2 - y_ref)))
    assert err2 < 1e-4, f"two-pass path mismatch vs reference: {err2}"

    print("KERNEL_OK")
</pallas_src>

<mosaic_0001>
module attributes {stable_mosaic.version = 11 : i64} {
  func.func @_fused_kernel(%arg0: i32, %arg1: memref<8xf32, #tpu.memory_space<smem>>, %arg2: memref<2x16x16xf32, #tpu.memory_space<vmem>>, %arg3: memref<2x15x15xf32, #tpu.memory_space<vmem>>) attributes {dimension_semantics = [#tpu.dimension_semantics<arbitrary>], iteration_bounds = array<i64: 1>, scalar_prefetch = 0 : i64, scratch_operands = 0 : i64, tpu.core_type = #tpu.core_type<tc>, window_params = [{transform_indices = @transform_0, window_bounds = array<i64: 8>}, {pipeline_mode = #tpu.pipeline_mode<synchronous>, transform_indices = @transform_1, window_bounds = array<i64: 2, 16, 16>}, {pipeline_mode = #tpu.pipeline_mode<synchronous>, transform_indices = @transform_2, window_bounds = array<i64: 2, 15, 15>}]} {
    %c0 = arith.constant 0 : index
    %c0_0 = arith.constant 0 : index
    %c0_1 = arith.constant 0 : index
    %0 = vector.load %arg2[%c0, %c0_0, %c0_1] : memref<2x16x16xf32, #tpu.memory_space<vmem>>, vector<2x16x16xf32>
    %c0_2 = arith.constant 0 : index
    %1 = memref.load %arg1[%c0_2] : memref<8xf32, #tpu.memory_space<smem>>
    %c1 = arith.constant 1 : index
    %2 = memref.load %arg1[%c1] : memref<8xf32, #tpu.memory_space<smem>>
    %c2 = arith.constant 2 : index
    %3 = memref.load %arg1[%c2] : memref<8xf32, #tpu.memory_space<smem>>
    %c3 = arith.constant 3 : index
    %4 = memref.load %arg1[%c3] : memref<8xf32, #tpu.memory_space<smem>>
    %5 = vector.extract_strided_slice %0 {offsets = [0, 0, 0], sizes = [2, 15, 15], strides = [1, 1, 1]} : vector<2x16x16xf32> to vector<2x15x15xf32>
    %6 = vector.broadcast %1 : f32 to vector<2x15x15xf32>
    %7 = arith.mulf %6, %5 : vector<2x15x15xf32>
    %8 = vector.extract_strided_slice %0 {offsets = [0, 0, 1], sizes = [2, 15, 15], strides = [1, 1, 1]} : vector<2x16x16xf32> to vector<2x15x15xf32>
    %9 = vector.broadcast %2 : f32 to vector<2x15x15xf32>
    %10 = arith.mulf %9, %8 : vector<2x15x15xf32>
    %11 = arith.addf %7, %10 : vector<2x15x15xf32>
    %12 = vector.extract_strided_slice %0 {offsets = [0, 1, 0], sizes = [2, 15, 15], strides = [1, 1, 1]} : vector<2x16x16xf32> to vector<2x15x15xf32>
    %13 = vector.broadcast %3 : f32 to vector<2x15x15xf32>
    %14 = arith.mulf %13, %12 : vector<2x15x15xf32>
    %15 = arith.addf %11, %14 : vector<2x15x15xf32>
    %16 = vector.extract_strided_slice %0 {offsets = [0, 1, 1], sizes = [2, 15, 15], strides = [1, 1, 1]} : vector<2x16x16xf32> to vector<2x15x15xf32>
    %17 = vector.broadcast %4 : f32 to vector<2x15x15xf32>
    %18 = arith.mulf %17, %16 : vector<2x15x15xf32>
    %19 = arith.addf %15, %18 : vector<2x15x15xf32>
    %20 = vector.shape_cast %19 : vector<2x15x15xf32> to vector<1x2x15x15xf32>
    %cst = arith.constant dense<0.000000e+00> : vector<1xf32>
    %21 = vector.multi_reduction <add>, %20, %cst [1, 2, 3] : vector<1x2x15x15xf32> to vector<1xf32>
    %22 = vector.shape_cast %21 : vector<1xf32> to vector<1x1x1x1xf32>
    %23 = vector.extract %22[0, 0, 0, 0] : f32 from vector<1x1x1x1xf32>
    %24 = vector.broadcast %23 : f32 to vector<1x1x1xf32>
    %25 = arith.mulf %19, %19 : vector<2x15x15xf32>
    %26 = vector.shape_cast %25 : vector<2x15x15xf32> to vector<1x2x15x15xf32>
    %cst_3 = arith.constant dense<0.000000e+00> : vector<1xf32>
    %27 = vector.multi_reduction <add>, %26, %cst_3 [1, 2, 3] : vector<1x2x15x15xf32> to vector<1xf32>
    %28 = vector.shape_cast %27 : vector<1xf32> to vector<1x1x1x1xf32>
    %29 = vector.extract %28[0, 0, 0, 0] : f32 from vector<1x1x1x1xf32>
    %30 = vector.broadcast %29 : f32 to vector<1x1x1xf32>
    %cst_4 = arith.constant 0.00222222228 : f32
    %31 = vector.broadcast %cst_4 : f32 to vector<1x1x1xf32>
    %32 = arith.mulf %24, %31 : vector<1x1x1xf32>
    %cst_5 = arith.constant 0.00222222228 : f32
    %33 = vector.broadcast %cst_5 : f32 to vector<1x1x1xf32>
    %34 = arith.mulf %30, %33 : vector<1x1x1xf32>
    %35 = arith.mulf %32, %32 : vector<1x1x1xf32>
    %36 = arith.subf %34, %35 : vector<1x1x1xf32>
    %cst_6 = arith.constant 0.000000e+00 : f32
    %37 = vector.broadcast %cst_6 : f32 to vector<1x1x1xf32>
    %38 = arith.maximumf %36, %37 : vector<1x1x1xf32>
    %cst_7 = arith.constant 9.99999974E-6 : f32
    %39 = vector.broadcast %cst_7 : f32 to vector<1x1x1xf32>
    %40 = arith.addf %38, %39 : vector<1x1x1xf32>
    %41 = math.rsqrt %40 : vector<1x1x1xf32>
    %c4 = arith.constant 4 : index
    %42 = memref.load %arg1[%c4] : memref<8xf32, #tpu.memory_space<smem>>
    %c5 = arith.constant 5 : index
    %43 = memref.load %arg1[%c5] : memref<8xf32, #tpu.memory_space<smem>>
    %c6 = arith.constant 6 : index
    %44 = memref.load %arg1[%c6] : memref<8xf32, #tpu.memory_space<smem>>
    %c7 = arith.constant 7 : index
    %45 = memref.load %arg1[%c7] : memref<8xf32, #tpu.memory_space<smem>>
    %46 = arith.mulf %44, %42 : f32
    %47 = vector.broadcast %46 : f32 to vector<1x1x1xf32>
    %48 = arith.mulf %47, %41 : vector<1x1x1xf32>
    %49 = vector.broadcast %42 : f32 to vector<1x1x1xf32>
    %50 = arith.mulf %49, %32 : vector<1x1x1xf32>
    %51 = arith.mulf %50, %41 : vector<1x1x1xf32>
    %52 = vector.broadcast %43 : f32 to vector<1x1x1xf32>
    %53 = arith.subf %52, %51 : vector<1x1x1xf32>
    %54 = vector.broadcast %44 : f32 to vector<1x1x1xf32>
    %55 = arith.mulf %54, %53 : vector<1x1x1xf32>
    %56 = vector.broadcast %45 : f32 to vector<1x1x1xf32>
    %57 = arith.addf %55, %56 : vector<1x1x1xf32>
    %58 = vector.broadcast %48 : vector<1x1x1xf32> to vector<2x15x15xf32>
    %59 = arith.mulf %58, %19 : vector<2x15x15xf32>
    %60 = vector.broadcast %57 : vector<1x1x1xf32> to vector<2x15x15xf32>
    %61 = arith.addf %59, %60 : vector<2x15x15xf32>
    %c0_8 = arith.constant 0 : index
    %c0_9 = arith.constant 0 : index
    %c0_10 = arith.constant 0 : index
    %62 = vector.load %arg3[%c0_8, %c0_9, %c0_10] : memref<2x15x15xf32, #tpu.memory_space<vmem>>, vector<2x15x15xf32>
    tpu.vector_store %arg3[%c0_8, %c0_9, %c0_10], %61 {strides = array<i32>} : memref<2x15x15xf32, #tpu.memory_space<vmem>>, vector<2x15x15xf32>,
    return
  }
  func.func @transform_0(%arg0: i32) -> i32 {
    %c0_i32 = arith.constant 0 : i32
    %c0_i32_0 = arith.constant 0 : i32
    return %c0_i32 : i32
  }
  func.func @transform_1(%arg0: i32) -> (i32, i32, i32) {
    %c0_i32 = arith.constant 0 : i32
    %c0_i32_0 = arith.constant 0 : i32
    %c0_i32_1 = arith.constant 0 : i32
    %c0_i32_2 = arith.constant 0 : i32
    return %c0_i32, %c0_i32_0, %c0_i32_1 : i32, i32, i32
  }
  func.func @transform_2(%arg0: i32) -> (i32, i32, i32) {
    %c0_i32 = arith.constant 0 : i32
    %c0_i32_0 = arith.constant 0 : i32
    %c0_i32_1 = arith.constant 0 : i32
    %c0_i32_2 = arith.constant 0 : i32
    return %c0_i32, %c0_i32_0, %c0_i32_1 : i32, i32, i32
  }
}

</mosaic_0001>

<llo_original>
// kernel: model_forward.1
$region0: #{model_forward.1}
  #allocation0 [shape = 'u32[]', space=smem, size = 0x4, offset = 0x4, fixed_abs, tag = 'smem constant byte address 0x4 - core index']
  #allocation1 [shape = 'u32[144,128]{1,0:T(1,128)}', space=vmem, size = 0x12000, scoped, tag = 'internal scratch']
  %s0 = inlined_call_operand.vmem [shape: f32[8], index: 0, kind: input, shape index: {}]
  %s1 = inlined_call_operand.vmem [shape: f32[2,16,16], index: 1, kind: input, shape index: {}]
  %s2 = inlined_call_operand.vmem [shape: f32[2,15,15], index: 2, kind: output, shape index: {}]
  %s3 = sld [smem:[#allocation0]]
  $region22: #{model_forward.1} parent=0
    _
  %s5 = ssub.s32 1, %s3
  %s6 = scalar_select 0, %s5, %s3
  $region1: #{model_forward.1} parent=0
    #allocation2 [shape = 'u8[512]{0}', space=smem, size = 0x200, scoped, tag = 'input window, operand 0, single buffered']
    #allocation3 [shape = 's32[1]{0}', space=sflag, size = 0x4, scoped, tag = 'scoped memory for model_forward.1']
    %7 = vsyncpa [#allocation3], 0
    // Predicated region
    $region2: #{model_forward.1} parent=1 // pred_check
      _
    $region3: #{model_forward.1} parent=1 // pred_check_branch
      %9 = sbr.rel (0) target = $region5
    $region4: #{model_forward.1} parent=1 // pred_region
      %s11 = ssub.s32 16, 16
      %12 = vsyncadd [#allocation3], %s11
      %s14 = sshll.u32 %s0, 4
      %s15 = int_to_ptr.vmem [resolvable:$true] %s14
      %17 = dma.vmem_to_smem %s15, 16, [#allocation2], [#allocation3]
    $region5: #{model_forward.1} parent=1 // pred_fallthru
      _
    // Predicated region
    $region6: #{model_forward.1} parent=1 // pred_check
      _
    $region7: #{model_forward.1} parent=1 // pred_check_branch
      %19 = sbr.rel (0) target = $region9
    $region8: #{model_forward.1} parent=1 // pred_region
      _
    $region9: #{model_forward.1} parent=1 // pred_fallthru
      _
    // Predicated region
    $region10: #{model_forward.1} parent=1 // pred_check
      _
    $region11: #{model_forward.1} parent=1 // pred_check_branch
      %21 = sbr.rel (0) target = $region13
    $region12: #{model_forward.1} parent=1 // pred_region
      %22 = dma.done [#allocation3], 16
    $region13: #{model_forward.1} parent=1 // pred_fallthru
      _
    %23 = sfence
    %v24 = vld [vmem:[%s1] sm:$0xff]
    %v25 = vld [vmem:[%s1 + $0x8] sm:$0xff]
    %v26 = vld [vmem:[%s1 + $0x10] sm:$0xff]
    %v27 = vld [vmem:[%s1 + $0x18] sm:$0xff]
    %s28 = sld [smem:[#allocation2]]
    %s29 = sld [smem:[#allocation2 + $0x1]]
    %s30 = sld [smem:[#allocation2 + $0x2]]
    %s31 = sld [smem:[#allocation2 + $0x3]]
    %v32 = vstv %s28
    %v33 = vmul.f32 %v32, %v24
    %v34 = vmul.f32 %v32, %v25
    %v35 = vmul.f32 %v32, %v26
    %v36 = vmul.f32 %v32, %v27
    %v37 = vstv %s29
    %v38 = vmul.f32 %v37, %v24
    %v39 = vmul.f32 %v37, %v25
    %v40 = vmul.f32 %v37, %v26
    %v41 = vmul.f32 %v37, %v27
    %46 = vrot.lane.b32.xlu0 %v38, 127
    %v47 = vpop.permute.xlu0 %46
    %48 = vrot.lane.b32.xlu0 %v39, 127
    %v49 = vpop.permute.xlu0 %48
    %50 = vrot.lane.b32.xlu0 %v40, 127
    %v51 = vpop.permute.xlu0 %50
    %52 = vrot.lane.b32.xlu0 %v41, 127
    %v53 = vpop.permute.xlu0 %52
    %v58 = vadd.f32 %v33, %v47
    %v59 = vadd.f32 %v34, %v49
    %v60 = vadd.f32 %v35, %v51
    %v61 = vadd.f32 %v36, %v53
    %v62 = vstv %s30
    %v63 = vmul.f32 %v62, %v24
    %v64 = vmul.f32 %v62, %v25
    %v65 = vmul.f32 %v62, %v26
    %v66 = vmul.f32 %v62, %v27
    %vm71 = vcmask 1046528
    %v72 = vrot.slane %v63, 1
    %v73 = vrot.slane %v64, 1
    %v74 = vsel %vm71, %v72, %v73
    %v75 = vrot.slane %v65, 1
    %v76 = vrot.slane %v66, 1
    %v77 = vsel %vm71, %v75, %v76
    %v82 = vadd.f32 %v58, %v74
    %v83 = vadd.f32 %v59, %v73
    %v84 = vadd.f32 %v60, %v77
    %v85 = vadd.f32 %v61, %v76
    %v86 = vstv %s31
    %v87 = vmul.f32 %v86, %v24
    %v88 = vmul.f32 %v86, %v25
    %v89 = vmul.f32 %v86, %v26
    %v90 = vmul.f32 %v86, %v27
    %v95 = vrot.slane %v87, 1
    %v96 = vrot.slane %v88, 1
    %v97 = vsel %vm71, %v95, %v96
    %v98 = vrot.slane %v89, 1
    %v99 = vrot.slane %v90, 1
    %v100 = vsel %vm71, %v98, %v99
    %101 = vrot.lane.b32.xlu0 %v97, 127
    %v102 = vpop.permute.xlu0 %101
    %103 = vrot.lane.b32.xlu0 %v96, 127
    %v104 = vpop.permute.xlu0 %103
    %105 = vrot.lane.b32.xlu0 %v100, 127
    %v106 = vpop.permute.xlu0 %105
    %107 = vrot.lane.b32.xlu0 %v99, 127
    %v108 = vpop.permute.xlu0 %107
    %v113 = vadd.f32 %v82, %v102
    %v114 = vadd.f32 %v83, %v104
    %v115 = vadd.f32 %v84, %v106
    %v116 = vadd.f32 %v85, %v108
    %vm117 = vcmask 121856
    %v118 = vsel %vm117, %v113, 0.0
    %vm119 = vcmask 120832
    %v120 = vsel %vm119, %v114, 0.0
    %v121 = vadd.f32 %v118, %v120
    %v122 = vsel %vm117, %v115, 0.0
    %v123 = vadd.f32 %v121, %v122
    %v124 = vsel %vm119, %v116, 0.0
    %v125 = vadd.f32 %v123, %v124
    %126 = vadd.xlane.f32.xlu0 %v125
    %v127 = vpop.xlane.xlu0 %126
    %v128 = vrot.slane %v127, 4
    %v129 = vadd.f32 %v127, %v128
    %v130 = vrot.slane %v129, 2
    %v131 = vadd.f32 %v129, %v130
    %v132 = vrot.slane %v131, 1
    %v133 = vadd.f32 %v131, %v132
    %s134 = vtos %v133
    %v135 = vstv %s134
    %v136 = vmul.f32 %v113, %v113
    %v137 = vmul.f32 %v114, %v114
    %v138 = vmul.f32 %v115, %v115
    %v139 = vmul.f32 %v116, %v116
    %v140 = vsel %vm117, %v136, 0.0
    %v141 = vsel %vm119, %v137, 0.0
    %v142 = vadd.f32 %v140, %v141
    %v143 = vsel %vm117, %v138, 0.0
    %v144 = vadd.f32 %v142, %v143
    %v145 = vsel %vm119, %v139, 0.0
    %v146 = vadd.f32 %v144, %v145
    %147 = vadd.xlane.f32.xlu0 %v146
    %v148 = vpop.xlane.xlu0 %147
    %v149 = vrot.slane %v148, 4
    %v150 = vadd.f32 %v148, %v149
    %v151 = vrot.slane %v150, 2
    %v152 = vadd.f32 %v150, %v151
    %v153 = vrot.slane %v152, 1
    %v154 = vadd.f32 %v152, %v153
    %s155 = vtos %v154
    %v156 = vstv %s155
    %v157 = vmul.f32 %v135, 0.0022222223
    %v158 = vmul.f32 %v156, 0.0022222223
    %v159 = vmul.f32 %v157, %v157
    %v160 = vsub.f32 %v158, %v159
    %v161 = vmax.f32 %v160, 0.0
    %v162 = vadd.f32 %v161, 1e-05
    %v163 = vrsqrt.pop %v162
    %s164 = sld [smem:[#allocation2 + $0x4]]
    %s165 = sld [smem:[#allocation2 + $0x5]]
    %s166 = sld [smem:[#allocation2 + $0x6]]
    %s167 = sld [smem:[#allocation2 + $0x7]]
    %s168 = smul.f32 %s166, %s164
    %v169 = vstv %s168
    %v170 = vmul.f32 %v169, %v163
    %v171 = vstv %s164
    %v172 = vmul.f32 %v171, %v157
    %v173 = vmul.f32 %v172, %v163
    %v174 = vstv %s165
    %v175 = vsub.f32 %v174, %v173
    %v176 = vstv %s166
    %v177 = vmul.f32 %v176, %v175
    %v178 = vstv %s167
    %v179 = vadd.f32 %v177, %v178
    %v180 = vmul.f32 %v170, %v113
    %v181 = vmul.f32 %v170, %v114
    %v182 = vmul.f32 %v170, %v115
    %v183 = vmul.f32 %v170, %v116
    %v184 = vadd.f32 %v180, %v179
    %v185 = vadd.f32 %v181, %v179
    %v186 = vadd.f32 %v182, %v179
    %v187 = vadd.f32 %v183, %v179
    %188 = vst.msk [vmem:[%s2] sm:$0xff] %vm117, %v184
    %189 = vst.msk [vmem:[%s2 + $0x8] sm:$0x7f] %vm119, %v185
    %190 = vst.msk [vmem:[%s2 + $0x10] sm:$0xff] %vm117, %v186
    %191 = vst.msk [vmem:[%s2 + $0x18] sm:$0x7f] %vm119, %v187
    // Predicated region
    $region14: #{model_forward.1} parent=1 // pred_check
      _
    $region15: #{model_forward.1} parent=1 // pred_check_branch
      %193 = sbr.rel (0) target = $region17
    $region16: #{model_forward.1} parent=1 // pred_region
      _
    $region17: #{model_forward.1} parent=1 // pred_fallthru
      _
    // Predicated region
    $region18: #{model_forward.1} parent=1 // pred_check
      _
    $region19: #{model_forward.1} parent=1 // pred_check_branch
      %195 = sbr.rel (0) target = $region21
    $region20: #{model_forward.1} parent=1 // pred_region
      _
    $region21: #{model_forward.1} parent=1 // pred_fallthru
      _
    %196 = vsyncpa [#allocation3], 1

</llo_original>
